<compile_context>
chip_gen: v7x
topology: tpu7x:2x2x1
jax: 0.10.0
libtpu: 0.0.40
codegen_flags: <defaults>
</compile_context>

<pallas_src>
import functools

import jax
import jax.numpy as jnp
from jax.experimental import pallas as pl
from jax.experimental.pallas import tpu as pltpu


def _round_up(x, m):
    return ((x + m - 1) // m) * m


def _vmem_capacity_bytes():
    try:
        return int(pltpu.get_tpu_info().vmem_capacity_bytes)
    except Exception:
        return 64 * 1024 * 1024  # assume the smallest generation (v7x: 64 MiB/TC)


# ----------------------------------------------------------------------------
# Kernels (one batch tile each).  All widths are pre-padded to 128 multiples.
# ----------------------------------------------------------------------------
def _kernel_proj(x_ref, w1s_ref, b1_ref, w2_ref, b2_ref, o_ref):
    """Projection-shortcut variant.

    w1s = [W1 | Ws] concatenated along N -> one wide MXU pass covers both
    x-side matmuls.  b2 already contains the folded shortcut bias.
    """
    hp = o_ref.shape[-1]
    x = x_ref[...]
    xw = jnp.dot(x, w1s_ref[...], preferred_element_type=jnp.float32)
    h = jnp.maximum(xw[:, :hp] + b1_ref[...], 0.0)
    out = jnp.dot(h, w2_ref[...], preferred_element_type=jnp.float32)
    out = out + b2_ref[...] + xw[:, hp:]
    o_ref[...] = jnp.maximum(out, 0.0).astype(o_ref.dtype)


def _kernel_identity(x_ref, w1_ref, b1_ref, w2_ref, b2_ref, o_ref):
    """Identity-shortcut variant: the residual is x itself (no extra MXU pass)."""
    x = x_ref[...]
    h = jnp.dot(x, w1_ref[...], preferred_element_type=jnp.float32) + b1_ref[...]
    h = jnp.maximum(h, 0.0)
    out = jnp.dot(h, w2_ref[...], preferred_element_type=jnp.float32)
    out = out + b2_ref[...] + x
    o_ref[...] = jnp.maximum(out, 0.0).astype(o_ref.dtype)


# ----------------------------------------------------------------------------
# pallas_call wrapper (shared by both variants)
# ----------------------------------------------------------------------------
def _pallas_forward(kernel, x, weights, out_ch, block_batch, single_buffer_weights):
    batch, in_ch = x.shape
    hp = int(weights[2].shape[0])          # w2 is (hp, hp)
    kp = _round_up(in_ch, 128)             # lane-padded contraction dim

    # batch tile: large, multiple of 8, and at least 2 grid steps when possible
    bb = min(_round_up(block_batch, 8), _round_up(batch, 8))
    if batch > 8:
        bb = min(bb, _round_up((batch + 1) // 2, 8))

    # shrink bb until the resident footprint fits a conservative VMEM budget
    wmul = 1 if single_buffer_weights else 2
    weight_bytes = wmul * sum(4 * int(w.size) for w in weights)
    capacity = _vmem_capacity_bytes()

    def tile_bytes(b):
        # x/out double-buffers + in-body f32 temporaries (xw, h, out)
        return 4 * b * (2 * kp + 5 * hp)

    budget = capacity // 2
    while bb > 8 and weight_bytes + tile_bytes(bb) > budget:
        bb = max(8, _round_up(bb // 2, 8))

    batch_pad = _round_up(batch, bb)
    if batch_pad != batch or kp != in_ch:
        x = jnp.pad(x, ((0, batch_pad - batch), (0, kp - in_ch)))
    grid = (batch_pad // bb,)

    def w_spec(shape):
        if single_buffer_weights:
            # constant index_map -> single buffer (halves resident weight VMEM)
            return pl.BlockSpec(shape, lambda i: (0, 0),
                                pipeline_mode=pl.Buffered(1))
        return pl.BlockSpec(shape, lambda i: (0, 0))

    in_specs = [pl.BlockSpec((bb, kp), lambda i: (i, 0))]
    in_specs += [w_spec(tuple(int(d) for d in w.shape)) for w in weights]
    out_spec = pl.BlockSpec((bb, hp), lambda i: (i, 0))

    flops = sum(2 * batch_pad * int(w.shape[0]) * int(w.shape[1])
                for w in weights if int(w.shape[0]) > 1)
    bytes_accessed = weight_bytes // wmul + 4 * batch_pad * (kp + hp)
    vmem_limit = min(capacity,
                     max(32 << 20, weight_bytes + tile_bytes(bb) + (16 << 20)))

    y = pl.pallas_call(
        kernel,
        out_shape=jax.ShapeDtypeStruct((batch_pad, hp), jnp.float32),
        grid_spec=pltpu.PrefetchScalarGridSpec(
            num_scalar_prefetch=0,
            grid=grid,
            in_specs=in_specs,
            out_specs=out_spec,
        ),
        compiler_params=pltpu.CompilerParams(
            dimension_semantics=("parallel",),
            vmem_limit_bytes=int(vmem_limit),
        ),
        cost_estimate=pl.CostEstimate(
            flops=int(flops), transcendentals=0,
            bytes_accessed=int(bytes_accessed)),
    )(x, *weights)

    return y[:batch, :out_ch]


@functools.partial(
    jax.jit,
    static_argnames=("proj", "out_ch", "block_batch", "single_buffer_weights"))
def _forward_jit(x, wa, b1, w2, b2, *, proj, out_ch, block_batch,
                 single_buffer_weights):
    kernel = _kernel_proj if proj else _kernel_identity
    return _pallas_forward(kernel, x, (wa, b1, w2, b2), out_ch,
                           block_batch, single_buffer_weights)


def residual_block_forward(x, prep, *, block_batch=512):
    """ResidualBlock forward.  x: (batch, in_channels) f32; prep from prepare_params."""
    wa, b1, w2, b2 = prep["arrays"]
    kwargs = dict(proj=prep["proj"], out_ch=prep["out_ch"],
                  block_batch=block_batch)
    try:
        return _forward_jit(x, wa, b1, w2, b2,
                            single_buffer_weights=True, **kwargs)
    except Exception:
        # Fallback if this jax build rejects pipeline_mode=pl.Buffered(1):
        # default double-buffered weights (still correct, slightly more VMEM).
        return _forward_jit(x, wa, b1, w2, b2,
                            single_buffer_weights=False, **kwargs)


# ----------------------------------------------------------------------------
# One-time parameter preparation (BN folding, transpose, bias fuse, lane pad)
# ----------------------------------------------------------------------------
def _fold_bn(w_t, b, gamma, beta, mean, var, eps=1e-5):
    # eval-mode BN folded into the preceding linear; w_t: (in, out), b: (out,)
    s = gamma / jnp.sqrt(var + eps)
    return w_t * s[None, :], (b - mean) * s + beta


def _pad_to(a, shape):
    pads = [(0, t - s) for s, t in zip(a.shape, shape)]
    if all(p == (0, 0) for p in pads):
        return a
    return jnp.pad(a, pads)


def prepare_params(params, eps=1e-5):
    """Run once per parameter set; the per-call path is then just the kernel."""
    out_ch, in_ch = params["w1"].shape
    kp = _round_up(in_ch, 128)
    hp = _round_up(out_ch, 128)

    w1f, b1f = _fold_bn(params["w1"].T, params["b1"], *params["bn1"], eps=eps)
    w2f, b2f = _fold_bn(params["w2"].T, params["b2"], *params["bn2"], eps=eps)

    w1p = _pad_to(w1f, (kp, hp))
    b1p = _pad_to(b1f.reshape(1, -1), (1, hp))
    w2p = _pad_to(w2f, (hp, hp))

    if "ws" in params:
        wsf, bsf = _fold_bn(params["ws"].T, params["bs"], *params["bns"], eps=eps)
        wsp = _pad_to(wsf, (kp, hp))
        wa = jnp.concatenate([w1p, wsp], axis=1)              # x @ [W1 | Ws]
        b2p = _pad_to((b2f + bsf).reshape(1, -1), (1, hp))     # fold shortcut bias
        proj = True
    else:
        wa = w1p
        b2p = _pad_to(b2f.reshape(1, -1), (1, hp))
        proj = False

    arrays = tuple(jax.device_put(a.astype(jnp.float32))
                   for a in (wa, b1p, w2p, b2p))
    return {"proj": proj, "out_ch": int(out_ch), "arrays": arrays}


# ----------------------------------------------------------------------------
# Deterministic parameter init (PyTorch layouts; BN has non-trivial stats).
# ----------------------------------------------------------------------------
def init_params(key, in_channels, out_channels):
    def linear(k, fan_in, fan_out):
        kw, kb = jax.random.split(k)
        bound = 1.0 / (fan_in ** 0.5)
        w = jax.random.uniform(kw, (fan_out, fan_in), jnp.float32, -bound, bound)
        b = jax.random.uniform(kb, (fan_out,), jnp.float32, -bound, bound)
        return w, b

    def bn_stats(k, n):
        kg, kb, km, kv = jax.random.split(k, 4)
        gamma = jax.random.uniform(kg, (n,), jnp.float32, 0.5, 1.5)
        beta = 0.1 * jax.random.normal(kb, (n,), jnp.float32)
        mean = 0.1 * jax.random.normal(km, (n,), jnp.float32)
        var = jax.random.uniform(kv, (n,), jnp.float32, 0.5, 1.5)
        return (gamma, beta, mean, var)

    k1, k2, k3, k4, k5, k6 = jax.random.split(key, 6)
    params = {}
    params["w1"], params["b1"] = linear(k1, in_channels, out_channels)
    params["bn1"] = bn_stats(k2, out_channels)
    params["w2"], params["b2"] = linear(k3, out_channels, out_channels)
    params["bn2"] = bn_stats(k4, out_channels)
    if in_channels != out_channels:
        params["ws"], params["bs"] = linear(k5, in_channels, out_channels)
        params["bns"] = bn_stats(k6, out_channels)
    return params


# ----------------------------------------------------------------------------
# Pure-JAX reference (unfused eval-mode BN) for correctness checking.
# ----------------------------------------------------------------------------
def reference_forward(x, params, eps=1e-5):
    def bn(h, p):
        gamma, beta, mean, var = p
        return (h - mean) / jnp.sqrt(var + eps) * gamma + beta

    h = x @ params["w1"].T + params["b1"]
    h = bn(h, params["bn1"])
    h = jnp.maximum(h, 0.0)
    h = h @ params["w2"].T + params["b2"]
    h = bn(h, params["bn2"])
    if "ws" in params:
        r = x @ params["ws"].T + params["bs"]
        r = bn(r, params["bns"])
    else:
        r = x
    return jnp.maximum(h + r, 0.0)


if __name__ == "__main__":
    key = jax.random.PRNGKey(0)
    k_p1, k_p2, k_x1, k_x2 = jax.random.split(key, 4)

    # Case 1: projection shortcut (in_channels != out_channels)
    batch, in_ch, out_ch = 16, 32, 64
    params = init_params(k_p1, in_ch, out_ch)
    prep = prepare_params(params)
    x = jax.random.normal(k_x1, (batch, in_ch), dtype=jnp.float32)
    y = jax.block_until_ready(residual_block_forward(x, prep))
    y_ref = reference_forward(x, params)
    assert y.shape == (batch, out_ch), y.shape
    assert jnp.allclose(y, y_ref, atol=1e-4, rtol=1e-4), "projection case mismatch"

    # Case 2: identity shortcut (in_channels == out_channels)
    params_id = init_params(k_p2, out_ch, out_ch)
    prep_id = prepare_params(params_id)
    x_id = jax.random.normal(k_x2, (batch, out_ch), dtype=jnp.float32)
    y_id = jax.block_until_ready(residual_block_forward(x_id, prep_id))
    y_id_ref = reference_forward(x_id, params_id)
    assert y_id.shape == (batch, out_ch), y_id.shape
    assert jnp.allclose(y_id, y_id_ref, atol=1e-4, rtol=1e-4), "identity case mismatch"

    print("KERNEL_OK")
</pallas_src>

<mosaic_0001>
module attributes {stable_mosaic.version = 11 : i64} {
  func.func @_kernel_proj(%arg0: i32, %arg1: memref<8x128xf32, #tpu.memory_space<vmem>>, %arg2: memref<128x256xf32, #tpu.memory_space<vmem>>, %arg3: memref<1x128xf32, #tpu.memory_space<vmem>>, %arg4: memref<128x128xf32, #tpu.memory_space<vmem>>, %arg5: memref<1x128xf32, #tpu.memory_space<vmem>>, %arg6: memref<8x128xf32, #tpu.memory_space<vmem>>) attributes {dimension_semantics = [#tpu.dimension_semantics<parallel>], iteration_bounds = array<i64: 2>, scalar_prefetch = 0 : i64, scratch_operands = 0 : i64, tpu.core_type = #tpu.core_type<tc>, window_params = [{transform_indices = @transform_0, window_bounds = array<i64: 8, 128>}, {pipeline_mode = #tpu.pipeline_mode<synchronous>, transform_indices = @transform_1, window_bounds = array<i64: 128, 256>}, {pipeline_mode = #tpu.pipeline_mode<synchronous>, transform_indices = @transform_2, window_bounds = array<i64: 1, 128>}, {pipeline_mode = #tpu.pipeline_mode<synchronous>, transform_indices = @transform_3, window_bounds = array<i64: 128, 128>}, {pipeline_mode = #tpu.pipeline_mode<synchronous>, transform_indices = @transform_4, window_bounds = array<i64: 1, 128>}, {transform_indices = @transform_5, window_bounds = array<i64: 8, 128>}]} {
    %c0 = arith.constant 0 : index
    %c0_0 = arith.constant 0 : index
    %0 = vector.load %arg1[%c0, %c0_0] : memref<8x128xf32, #tpu.memory_space<vmem>>, vector<8x128xf32>
    %c0_1 = arith.constant 0 : index
    %c0_2 = arith.constant 0 : index
    %1 = vector.load %arg2[%c0_1, %c0_2] : memref<128x256xf32, #tpu.memory_space<vmem>>, vector<128x256xf32>
    %cst = arith.constant dense<0.000000e+00> : vector<8x256xf32>
    %2 = tpu.matmul %0, %1, %cst {dimension_numbers = #tpu.dot_dimension_numbers<[1], [0], [0], [1], [0, 0, 1, 1], [], []>} : vector<8x128xf32>, vector<128x256xf32>, vector<8x256xf32> -> vector<8x256xf32>
    %3 = vector.extract_strided_slice %2 {offsets = [0, 0], sizes = [8, 128], strides = [1, 1]} : vector<8x256xf32> to vector<8x128xf32>
    %c0_3 = arith.constant 0 : index
    %c0_4 = arith.constant 0 : index
    %4 = vector.load %arg3[%c0_3, %c0_4] : memref<1x128xf32, #tpu.memory_space<vmem>>, vector<1x128xf32>
    %5 = vector.broadcast %4 : vector<1x128xf32> to vector<8x128xf32>
    %6 = arith.addf %3, %5 : vector<8x128xf32>
    %cst_5 = arith.constant 0.000000e+00 : f32
    %7 = vector.broadcast %cst_5 : f32 to vector<8x128xf32>
    %8 = arith.maximumf %6, %7 : vector<8x128xf32>
    %c0_6 = arith.constant 0 : index
    %c0_7 = arith.constant 0 : index
    %9 = vector.load %arg4[%c0_6, %c0_7] : memref<128x128xf32, #tpu.memory_space<vmem>>, vector<128x128xf32>
    %cst_8 = arith.constant dense<0.000000e+00> : vector<8x128xf32>
    %10 = tpu.matmul %8, %9, %cst_8 {dimension_numbers = #tpu.dot_dimension_numbers<[1], [0], [0], [1], [0, 0, 1, 1], [], []>} : vector<8x128xf32>, vector<128x128xf32>, vector<8x128xf32> -> vector<8x128xf32>
    %c0_9 = arith.constant 0 : index
    %c0_10 = arith.constant 0 : index
    %11 = vector.load %arg5[%c0_9, %c0_10] : memref<1x128xf32, #tpu.memory_space<vmem>>, vector<1x128xf32>
    %12 = vector.broadcast %11 : vector<1x128xf32> to vector<8x128xf32>
    %13 = arith.addf %10, %12 : vector<8x128xf32>
    %14 = vector.extract_strided_slice %2 {offsets = [0, 128], sizes = [8, 128], strides = [1, 1]} : vector<8x256xf32> to vector<8x128xf32>
    %15 = arith.addf %13, %14 : vector<8x128xf32>
    %cst_11 = arith.constant 0.000000e+00 : f32
    %16 = vector.broadcast %cst_11 : f32 to vector<8x128xf32>
    %17 = arith.maximumf %15, %16 : vector<8x128xf32>
    %c0_12 = arith.constant 0 : index
    %c0_13 = arith.constant 0 : index
    %18 = vector.load %arg6[%c0_12, %c0_13] : memref<8x128xf32, #tpu.memory_space<vmem>>, vector<8x128xf32>
    tpu.vector_store %arg6[%c0_12, %c0_13], %17 {strides = array<i32>} : memref<8x128xf32, #tpu.memory_space<vmem>>, vector<8x128xf32>,
    return
  }
  func.func @transform_0(%arg0: i32) -> (i32, i32) {
    %c0_i32 = arith.constant 0 : i32
    %c0_i32_0 = arith.constant 0 : i32
    return %arg0, %c0_i32 : i32, i32
  }
  func.func @transform_1(%arg0: i32) -> (i32, i32) {
    %c0_i32 = arith.constant 0 : i32
    %c0_i32_0 = arith.constant 0 : i32
    %c0_i32_1 = arith.constant 0 : i32
    return %c0_i32, %c0_i32_0 : i32, i32
  }
  func.func @transform_2(%arg0: i32) -> (i32, i32) {
    %c0_i32 = arith.constant 0 : i32
    %c0_i32_0 = arith.constant 0 : i32
    %c0_i32_1 = arith.constant 0 : i32
    return %c0_i32, %c0_i32_0 : i32, i32
  }
  func.func @transform_3(%arg0: i32) -> (i32, i32) {
    %c0_i32 = arith.constant 0 : i32
    %c0_i32_0 = arith.constant 0 : i32
    %c0_i32_1 = arith.constant 0 : i32
    return %c0_i32, %c0_i32_0 : i32, i32
  }
  func.func @transform_4(%arg0: i32) -> (i32, i32) {
    %c0_i32 = arith.constant 0 : i32
    %c0_i32_0 = arith.constant 0 : i32
    %c0_i32_1 = arith.constant 0 : i32
    return %c0_i32, %c0_i32_0 : i32, i32
  }
  func.func @transform_5(%arg0: i32) -> (i32, i32) {
    %c0_i32 = arith.constant 0 : i32
    %c0_i32_0 = arith.constant 0 : i32
    return %arg0, %c0_i32 : i32, i32
  }
}

module attributes {stable_mosaic.version = 11 : i64} {
  func.func @_kernel_proj(%arg0: i32, %arg1: memref<8x128xf32, #tpu.memory_space<vmem>>, %arg2: memref<128x256xf32, #tpu.memory_space<vmem>>, %arg3: memref<1x128xf32, #tpu.memory_space<vmem>>, %arg4: memref<128x128xf32, #tpu.memory_space<vmem>>, %arg5: memref<1x128xf32, #tpu.memory_space<vmem>>, %arg6: memref<8x128xf32, #tpu.memory_space<vmem>>) attributes {dimension_semantics = [#tpu.dimension_semantics<parallel>], iteration_bounds = array<i64: 2>, scalar_prefetch = 0 : i64, scratch_operands = 0 : i64, tpu.core_type = #tpu.core_type<tc>, window_params = [{transform_indices = @transform_0, window_bounds = array<i64: 8, 128>}, {pipeline_mode = #tpu.pipeline_mode<synchronous>, transform_indices = @transform_1, window_bounds = array<i64: 128, 256>}, {pipeline_mode = #tpu.pipeline_mode<synchronous>, transform_indices = @transform_2, window_bounds = array<i64: 1, 128>}, {pipeline_mode = #tpu.pipeline_mode<synchronous>, transform_indices = @transform_3, window_bounds = array<i64: 128, 128>}, {pipeline_mode = #tpu.pipeline_mode<synchronous>, transform_indices = @transform_4, window_bounds = array<i64: 1, 128>}, {transform_indices = @transform_5, window_bounds = array<i64: 8, 128>}]} {
    %c0 = arith.constant 0 : index
    %c0_0 = arith.constant 0 : index
    %0 = vector.load %arg1[%c0, %c0_0] : memref<8x128xf32, #tpu.memory_space<vmem>>, vector<8x128xf32>
    %c0_1 = arith.constant 0 : index
    %c0_2 = arith.constant 0 : index
    %1 = vector.load %arg2[%c0_1, %c0_2] : memref<128x256xf32, #tpu.memory_space<vmem>>, vector<128x256xf32>
    %cst = arith.constant dense<0.000000e+00> : vector<8x256xf32>
    %2 = tpu.matmul %0, %1, %cst {dimension_numbers = #tpu.dot_dimension_numbers<[1], [0], [0], [1], [0, 0, 1, 1], [], []>} : vector<8x128xf32>, vector<128x256xf32>, vector<8x256xf32> -> vector<8x256xf32>
    %3 = vector.extract_strided_slice %2 {offsets = [0, 0], sizes = [8, 128], strides = [1, 1]} : vector<8x256xf32> to vector<8x128xf32>
    %c0_3 = arith.constant 0 : index
    %c0_4 = arith.constant 0 : index
    %4 = vector.load %arg3[%c0_3, %c0_4] : memref<1x128xf32, #tpu.memory_space<vmem>>, vector<1x128xf32>
    %5 = vector.broadcast %4 : vector<1x128xf32> to vector<8x128xf32>
    %6 = arith.addf %3, %5 : vector<8x128xf32>
    %cst_5 = arith.constant 0.000000e+00 : f32
    %7 = vector.broadcast %cst_5 : f32 to vector<8x128xf32>
    %8 = arith.maximumf %6, %7 : vector<8x128xf32>
    %c0_6 = arith.constant 0 : index
    %c0_7 = arith.constant 0 : index
    %9 = vector.load %arg4[%c0_6, %c0_7] : memref<128x128xf32, #tpu.memory_space<vmem>>, vector<128x128xf32>
    %cst_8 = arith.constant dense<0.000000e+00> : vector<8x128xf32>
    %10 = tpu.matmul %8, %9, %cst_8 {dimension_numbers = #tpu.dot_dimension_numbers<[1], [0], [0], [1], [0, 0, 1, 1], [], []>} : vector<8x128xf32>, vector<128x128xf32>, vector<8x128xf32> -> vector<8x128xf32>
    %c0_9 = arith.constant 0 : index
    %c0_10 = arith.constant 0 : index
    %11 = vector.load %arg5[%c0_9, %c0_10] : memref<1x128xf32, #tpu.memory_space<vmem>>, vector<1x128xf32>
    %12 = vector.broadcast %11 : vector<1x128xf32> to vector<8x128xf32>
    %13 = arith.addf %10, %12 : vector<8x128xf32>
    %14 = vector.extract_strided_slice %2 {offsets = [0, 128], sizes = [8, 128], strides = [1, 1]} : vector<8x256xf32> to vector<8x128xf32>
    %15 = arith.addf %13, %14 : vector<8x128xf32>
    %cst_11 = arith.constant 0.000000e+00 : f32
    %16 = vector.broadcast %cst_11 : f32 to vector<8x128xf32>
    %17 = arith.maximumf %15, %16 : vector<8x128xf32>
    %c0_12 = arith.constant 0 : index
    %c0_13 = arith.constant 0 : index
    %18 = vector.load %arg6[%c0_12, %c0_13] : memref<8x128xf32, #tpu.memory_space<vmem>>, vector<8x128xf32>
    tpu.vector_store %arg6[%c0_12, %c0_13], %17 {strides = array<i32>} : memref<8x128xf32, #tpu.memory_space<vmem>>, vector<8x128xf32>,
    return
  }
  func.func @transform_0(%arg0: i32) -> (i32, i32) {
    %c0_i32 = arith.constant 0 : i32
    %c0_i32_0 = arith.constant 0 : i32
    return %arg0, %c0_i32 : i32, i32
  }
  func.func @transform_1(%arg0: i32) -> (i32, i32) {
    %c0_i32 = arith.constant 0 : i32
    %c0_i32_0 = arith.constant 0 : i32
    %c0_i32_1 = arith.constant 0 : i32
    return %c0_i32, %c0_i32_0 : i32, i32
  }
  func.func @transform_2(%arg0: i32) -> (i32, i32) {
    %c0_i32 = arith.constant 0 : i32
    %c0_i32_0 = arith.constant 0 : i32
    %c0_i32_1 = arith.constant 0 : i32
    return %c0_i32, %c0_i32_0 : i32, i32
  }
  func.func @transform_3(%arg0: i32) -> (i32, i32) {
    %c0_i32 = arith.constant 0 : i32
    %c0_i32_0 = arith.constant 0 : i32
    %c0_i32_1 = arith.constant 0 : i32
    return %c0_i32, %c0_i32_0 : i32, i32
  }
  func.func @transform_4(%arg0: i32) -> (i32, i32) {
    %c0_i32 = arith.constant 0 : i32
    %c0_i32_0 = arith.constant 0 : i32
    %c0_i32_1 = arith.constant 0 : i32
    return %c0_i32, %c0_i32_0 : i32, i32
  }
  func.func @transform_5(%arg0: i32) -> (i32, i32) {
    %c0_i32 = arith.constant 0 : i32
    %c0_i32_0 = arith.constant 0 : i32
    return %arg0, %c0_i32 : i32, i32
  }
}

</mosaic_0001>

<llo_original>
// kernel: _forward_jit.1
$region0: #{_forward_jit.1}
  #allocation0 [shape = 'u32[]', space=smem, size = 0x4, offset = 0x4, fixed_abs, tag = 'smem constant byte address 0x4 - core index']
  #allocation1 [shape = 'u32[144,128]{1,0:T(1,128)}', space=vmem, size = 0x12000, scoped, tag = 'internal scratch']
  %s0 = inlined_call_operand.vmem [shape: f32[16,128], index: 0, kind: input, shape index: {}]
  %s1 = inlined_call_operand.hbm [shape: f32[128,256], index: 1, kind: input, shape index: {}]
  %s2 = inlined_call_operand.vmem [shape: f32[1,128], index: 2, kind: input, shape index: {}]
  %s3 = inlined_call_operand.hbm [shape: f32[128,128], index: 3, kind: input, shape index: {}]
  %s4 = inlined_call_operand.vmem [shape: f32[1,128], index: 4, kind: input, shape index: {}]
  %s5 = inlined_call_operand.hbm [shape: f32[16,128], index: 5, kind: output, shape index: {}]
  %s6 = sld [smem:[#allocation0]]
  $region61: #{_forward_jit.1} parent=0
    _
  %s8 = ssub.s32 1, %s6
  %s9 = scalar_select 0, %s8, %s6
  $region1: #{_forward_jit.1} parent=0
    #allocation2 [shape = 'u8[131072]{0}', space=vmem, size = 0x20000, scoped, tag = 'input window, operand 1, single buffered']
    #allocation3 [shape = 's32[2]{0}', space=sflag, size = 0x8, scoped, tag = 'scoped memory for _forward_jit.1']
    #allocation4 [shape = 's32[2]{0}', space=sflag, size = 0x8, scoped, tag = 'scoped memory for _forward_jit.1']
    #allocation5 [shape = 'u8[65536]{0}', space=vmem, size = 0x10000, scoped, tag = 'input window, operand 3, single buffered']
    #allocation6 [shape = 's32[1]{0}', space=sflag, size = 0x4, scoped, tag = 'scoped memory for _forward_jit.1']
    #allocation7 [shape = 'u8[8192]{0}', space=vmem, size = 0x2000, scoped, tag = 'output window, operand 0']
    %10 = vsyncpa [#allocation3], 0
    %11 = vsyncpa [#allocation6], 0
    %12 = vsyncpa [#allocation4], 0
    %s13 = scalar_lea.sflag [#allocation4], 1
    %14 = vsyncpa %s13, 0
    loop: start=0, step=1, limit=4
    $region2: #{_forward_jit.1} parent=1 // loop_pre_header
      _
    $region3: #{_forward_jit.1} parent=1 // loop_header
      %s16 = sphi 0, %s20
      %p17 = scmp.ge.s32.totalorder %s16, 4
      %s26 = sphi 0, %s28
      %s29 = sphi 0, %s26
      %s30 = sphi 0, %s29
      %s46 = sphi 0, %s30
      %s50 = sphi 0, %s50
      %s52 = sphi 0, %s50
      %s53 = sphi 0, %s52
      %s67 = sphi 0, %s53
      %s71 = sphi 0, %s71
      %s73 = sphi 0, %s71
      %s74 = sphi 0, %s73
      %s88 = sphi 0, %s74
      %s92 = sphi 0, %s92
      %s94 = sphi 0, %s92
      %s95 = sphi 0, %s94
      %s109 = sphi 0, %s95
      %s113 = sphi 0, %s113
      %s115 = sphi 0, %s113
      %s116 = sphi 0, %s115
      %s130 = sphi 0, %s116
      %s136 = sphi 0, %s138
      %s139 = sphi 0, %s136
      %s140 = sphi 0, %s139
      %s156 = sphi 0, %s140
    $region4: #{_forward_jit.1} parent=1 // loop_header_branch
      %19 = sbr.rel (%p17) target = $region8
    $region5: #{_forward_jit.1} parent=1 // loop_body
      %s21 = ssub.s32 %s16, 1
      %s22 = ssub.s32 %s16, 2
      %s23 = sadd.s32 %s16, 1
      %s24 = ssub.s32 %s16, %s23
      %p25 = scmp.eq.s32.totalorder %s24, 0
      %s27 = sadd.s32 %s26, 1
      %s28 = scalar_select %p25, %s26, %s27
      %p31 = pneg %p25
      %p32 = scmp.eq.s32.totalorder %s16, 1
      %p33 = por %p31, %p32
      %p34 = scmp.ne.s32.totalorder %s26, %s29
      %p35 = scmp.eq.s32.totalorder %s16, 0
      %p36 = por %p34, %p35
      %p37 = scmp.ne.s32.totalorder %s26, %s29
      %p38 = scmp.eq.s32.totalorder %s21, 1
      %p39 = por %p37, %p38
      %p40 = scmp.ne.s32.totalorder %s29, %s30
      %p41 = scmp.eq.s32.totalorder %s21, 0
      %p42 = por %p40, %p41
      %p43 = scmp.ne.s32.totalorder %s29, %s30
      %p44 = scmp.eq.s32.totalorder %s22, 1
      %p45 = por %p43, %p44
      %p47 = scmp.ne.s32.totalorder %s30, %s46
      %p48 = scmp.eq.s32.totalorder %s22, 0
      %p49 = por %p47, %p48
      %s51 = sadd.s32 %s50, 1
      %p54 = scmp.eq.s32.totalorder %s16, 1
      %p55 = scmp.ne.s32.totalorder %s50, %s52
      %p56 = scmp.eq.s32.totalorder %s16, 0
      %p57 = por %p55, %p56
      %p58 = scmp.ne.s32.totalorder %s50, %s52
      %p59 = scmp.eq.s32.totalorder %s21, 1
      %p60 = por %p58, %p59
      %p61 = scmp.ne.s32.totalorder %s52, %s53
      %p62 = scmp.eq.s32.totalorder %s21, 0
      %p63 = por %p61, %p62
      %p64 = scmp.ne.s32.totalorder %s52, %s53
      %p65 = scmp.eq.s32.totalorder %s22, 1
      %p66 = por %p64, %p65
      %p68 = scmp.ne.s32.totalorder %s53, %s67
      %p69 = scmp.eq.s32.totalorder %s22, 0
      %p70 = por %p68, %p69
      %s72 = sadd.s32 %s71, 1
      %p75 = scmp.eq.s32.totalorder %s16, 1
      %p76 = scmp.ne.s32.totalorder %s71, %s73
      %p77 = scmp.eq.s32.totalorder %s16, 0
      %p78 = por %p76, %p77
      %p79 = scmp.ne.s32.totalorder %s71, %s73
      %p80 = scmp.eq.s32.totalorder %s21, 1
      %p81 = por %p79, %p80
      %p82 = scmp.ne.s32.totalorder %s73, %s74
      %p83 = scmp.eq.s32.totalorder %s21, 0
      %p84 = por %p82, %p83
      %p85 = scmp.ne.s32.totalorder %s73, %s74
      %p86 = scmp.eq.s32.totalorder %s22, 1
      %p87 = por %p85, %p86
      %p89 = scmp.ne.s32.totalorder %s74, %s88
      %p90 = scmp.eq.s32.totalorder %s22, 0
      %p91 = por %p89, %p90
      %s93 = sadd.s32 %s92, 1
      %p96 = scmp.eq.s32.totalorder %s16, 1
      %p97 = scmp.ne.s32.totalorder %s92, %s94
      %p98 = scmp.eq.s32.totalorder %s16, 0
      %p99 = por %p97, %p98
      %p100 = scmp.ne.s32.totalorder %s92, %s94
      %p101 = scmp.eq.s32.totalorder %s21, 1
      %p102 = por %p100, %p101
      %p103 = scmp.ne.s32.totalorder %s94, %s95
      %p104 = scmp.eq.s32.totalorder %s21, 0
      %p105 = por %p103, %p104
      %p106 = scmp.ne.s32.totalorder %s94, %s95
      %p107 = scmp.eq.s32.totalorder %s22, 1
      %p108 = por %p106, %p107
      %p110 = scmp.ne.s32.totalorder %s95, %s109
      %p111 = scmp.eq.s32.totalorder %s22, 0
      %p112 = por %p110, %p111
      %s114 = sadd.s32 %s113, 1
      %p117 = scmp.eq.s32.totalorder %s16, 1
      %p118 = scmp.ne.s32.totalorder %s113, %s115
      %p119 = scmp.eq.s32.totalorder %s16, 0
      %p120 = por %p118, %p119
      %p121 = scmp.ne.s32.totalorder %s113, %s115
      %p122 = scmp.eq.s32.totalorder %s21, 1
      %p123 = por %p121, %p122
      %p124 = scmp.ne.s32.totalorder %s115, %s116
      %p125 = scmp.eq.s32.totalorder %s21, 0
      %p126 = por %p124, %p125
      %p127 = scmp.ne.s32.totalorder %s115, %s116
      %p128 = scmp.eq.s32.totalorder %s22, 1
      %p129 = por %p127, %p128
      %p131 = scmp.ne.s32.totalorder %s116, %s130
      %p132 = scmp.eq.s32.totalorder %s22, 0
      %p133 = por %p131, %p132
      %s134 = ssub.s32 %s16, %s23
      %p135 = scmp.eq.s32.totalorder %s134, 0
      %s137 = sadd.s32 %s136, 1
      %s138 = scalar_select %p135, %s136, %s137
      %p141 = pneg %p135
      %p142 = scmp.eq.s32.totalorder %s16, 1
      %p143 = por %p141, %p142
      %p144 = scmp.ne.s32.totalorder %s136, %s139
      %p145 = scmp.eq.s32.totalorder %s16, 0
      %p146 = por %p144, %p145
      %p147 = scmp.ne.s32.totalorder %s136, %s139
      %p148 = scmp.eq.s32.totalorder %s21, 1
      %p149 = por %p147, %p148
      %p150 = scmp.ne.s32.totalorder %s139, %s140
      %p151 = scmp.eq.s32.totalorder %s21, 0
      %p152 = por %p150, %p151
      %p153 = scmp.ne.s32.totalorder %s139, %s140
      %p154 = scmp.eq.s32.totalorder %s22, 1
      %p155 = por %p153, %p154
      %p157 = scmp.ne.s32.totalorder %s140, %s156
      %p158 = scmp.eq.s32.totalorder %s22, 0
      %p159 = por %p157, %p158
      %p160 = scmp.le.s32.totalorder 1, %s16
      %p161 = scmp.lt.s32.totalorder %s16, 3
      %p162 = pnand %p160, %p161
      %p163 = pneg %p162
      // Predicated region
      $region9: #{_forward_jit.1} parent=5 // pred_check
        _
      $region10: #{_forward_jit.1} parent=5 // pred_check_branch
        %165 = sbr.rel (%p162) target = $region12
      $region11: #{_forward_jit.1} parent=5 // pred_region
        %s166 = ssub.s32 %s16, 1
        // Predicated region
        $region13: #{_forward_jit.1} parent=11 // pred_check
          %p167 = pneg %p63
        $region14: #{_forward_jit.1} parent=11 // pred_check_branch
          %169 = sbr.rel (%p167) target = $region16
        $region15: #{_forward_jit.1} parent=11 // pred_region
          %s171 = ssub.s32 4096, 4096
          %172 = vsyncadd [#allocation3], %s171
          %s173 = sshll.u32 [#allocation2], 4
          %s174 = int_to_ptr.vmem [resolvable:$true] %s173
          %179 = dma.hbm_to_vmem [thread:$0]  %s1, 4096, %s174, [#allocation3], 256, 256, 16
        $region16: #{_forward_jit.1} parent=11 // pred_fallthru
          _
        // Predicated region
        $region17: #{_forward_jit.1} parent=11 // pred_check
          %p180 = pneg %p84
        $region18: #{_forward_jit.1} parent=11 // pred_check_branch
          %182 = sbr.rel (%p180) target = $region20
        $region19: #{_forward_jit.1} parent=11 // pred_region
          _
        $region20: #{_forward_jit.1} parent=11 // pred_fallthru
          _
        // Predicated region
        $region21: #{_forward_jit.1} parent=11 // pred_check
          %p183 = pneg %p105
        $region22: #{_forward_jit.1} parent=11 // pred_check_branch
          %185 = sbr.rel (%p183) target = $region24
        $region23: #{_forward_jit.1} parent=11 // pred_region
          %s187 = ssub.s32 2048, 2048
          %188 = vsyncadd [#allocation6], %s187
          %s189 = sshll.u32 [#allocation5], 4
          %s190 = int_to_ptr.vmem [resolvable:$true] %s189
          %195 = dma.hbm_to_vmem [thread:$0]  %s3, 2048, %s190, [#allocation6], 128, 128, 8
        $region24: #{_forward_jit.1} parent=11 // pred_fallthru
          _
        // Predicated region
        $region25: #{_forward_jit.1} parent=11 // pred_check
          %p196 = pneg %p126
        $region26: #{_forward_jit.1} parent=11 // pred_check_branch
          %198 = sbr.rel (%p196) target = $region28
        $region27: #{_forward_jit.1} parent=11 // pred_region
          _
        $region28: #{_forward_jit.1} parent=11 // pred_fallthru
          _
      $region12: #{_forward_jit.1} parent=5 // pred_fallthru
        _
      %p199 = scmp.lt.s32.totalorder %s16, 2
      // Predicated region
      $region29: #{_forward_jit.1} parent=5 // pred_check
        %p200 = pneg %p199
      $region30: #{_forward_jit.1} parent=5 // pred_check_branch
        %202 = sbr.rel (%p200) target = $region32
      $region31: #{_forward_jit.1} parent=5 // pred_region
        // Predicated region
        $region33: #{_forward_jit.1} parent=31 // pred_check
          %p203 = pneg %p36
        $region34: #{_forward_jit.1} parent=31 // pred_check_branch
          %205 = sbr.rel (%p203) target = $region36
        $region35: #{_forward_jit.1} parent=31 // pred_region
          %p206 = scmp.lt.s32.totalorder %s16, 1
          %s207 = scalar_select %p206, %s16, 1
          %s208 = smul.addr %s207, 8
          %s209 = scalar_lea.vmem %s0, %s208
        $region36: #{_forward_jit.1} parent=31 // pred_fallthru
          _
      $region32: #{_forward_jit.1} parent=5 // pred_fallthru
        _
      %p210 = scmp.le.s32.totalorder 1, %s16
      %p211 = scmp.lt.s32.totalorder %s16, 3
      %p212 = pnand %p210, %p211
      %p213 = pneg %p212
      // Predicated region
      $region37: #{_forward_jit.1} parent=5 // pred_check
        _
      $region38: #{_forward_jit.1} parent=5 // pred_check_branch
        %215 = sbr.rel (%p212) target = $region40
      $region39: #{_forward_jit.1} parent=5 // pred_region
        %s216 = ssub.s32 %s16, 1
        // Predicated region
        $region41: #{_forward_jit.1} parent=39 // pred_check
          %p217 = pneg %p63
        $region42: #{_forward_jit.1} parent=39 // pred_check_branch
          %219 = sbr.rel (%p217) target = $region44
        $region43: #{_forward_jit.1} parent=39 // pred_region
          %220 = dma.done [#allocation3], 4096
        $region44: #{_forward_jit.1} parent=39 // pred_fallthru
          _
        // Predicated region
        $region45: #{_forward_jit.1} parent=39 // pred_check
          %p221 = pneg %p105
        $region46: #{_forward_jit.1} parent=39 // pred_check_branch
          %223 = sbr.rel (%p221) target = $region48
        $region47: #{_forward_jit.1} parent=39 // pred_region
          %224 = dma.done [#allocation6], 2048
        $region48: #{_forward_jit.1} parent=39 // pred_fallthru
          _
        %p225 = scmp.lt.s32.totalorder %s21, 1
        %s226 = scalar_select %p225, %s21, 1
        %s227 = smul.addr %s226, 8
        %s228 = scalar_lea.vmem %s0, %s227
        %p229 = pneg %p42
        %p230 = pneg %p39
        %p231 = pneg %p63
        %p232 = pneg %p60
        %p233 = pneg %p84
        %p234 = pneg %p81
        %p235 = pneg %p105
        %p236 = pneg %p102
        %p237 = pneg %p126
        %p238 = pneg %p123
        %p239 = pneg %p152
        %p240 = pneg %p149
        %s241 = sand.u32 %s139, 1
        %s242 = scalar_lea.sflag [#allocation4], %s241
        %s243 = sand.u32 %s139, 1
        %s244 = smul.addr %s243, 8
        %s245 = scalar_lea.vmem [#allocation7], %s244
        %p246 = scmp.lt.s32.totalorder %s21, 1
        %s247 = scalar_select %p246, %s21, 1
        %s248 = smul.addr %s247, 8
        %s249 = scalar_lea.vmem %s0, %s248
        %v250 = vld [vmem:[%s249] sm:$0xff]
        %v251 = vld [vmem:[#allocation2] sm:$0xff]
        %v252 = vld [vmem:[#allocation2 + $0x8] sm:$0xff]
        %v253 = vld [vmem:[#allocation2 + $0x10] sm:$0xff]
        %v254 = vld [vmem:[#allocation2 + $0x18] sm:$0xff]
        %v255 = vld [vmem:[#allocation2 + $0x20] sm:$0xff]
        %v256 = vld [vmem:[#allocation2 + $0x28] sm:$0xff]
        %v257 = vld [vmem:[#allocation2 + $0x30] sm:$0xff]
        %v258 = vld [vmem:[#allocation2 + $0x38] sm:$0xff]
        %v259 = vld [vmem:[#allocation2 + $0x40] sm:$0xff]
        %v260 = vld [vmem:[#allocation2 + $0x48] sm:$0xff]
        %v261 = vld [vmem:[#allocation2 + $0x50] sm:$0xff]
        %v262 = vld [vmem:[#allocation2 + $0x58] sm:$0xff]
        %v263 = vld [vmem:[#allocation2 + $0x60] sm:$0xff]
        %v264 = vld [vmem:[#allocation2 + $0x68] sm:$0xff]
        %v265 = vld [vmem:[#allocation2 + $0x70] sm:$0xff]
        %v266 = vld [vmem:[#allocation2 + $0x78] sm:$0xff]
        %v267 = vld [vmem:[#allocation2 + $0x80] sm:$0xff]
        %v268 = vld [vmem:[#allocation2 + $0x88] sm:$0xff]
        %v269 = vld [vmem:[#allocation2 + $0x90] sm:$0xff]
        %v270 = vld [vmem:[#allocation2 + $0x98] sm:$0xff]
        %v271 = vld [vmem:[#allocation2 + $0xa0] sm:$0xff]
        %v272 = vld [vmem:[#allocation2 + $0xa8] sm:$0xff]
        %v273 = vld [vmem:[#allocation2 + $0xb0] sm:$0xff]
        %v274 = vld [vmem:[#allocation2 + $0xb8] sm:$0xff]
        %v275 = vld [vmem:[#allocation2 + $0xc0] sm:$0xff]
        %v276 = vld [vmem:[#allocation2 + $0xc8] sm:$0xff]
        %v277 = vld [vmem:[#allocation2 + $0xd0] sm:$0xff]
        %v278 = vld [vmem:[#allocation2 + $0xd8] sm:$0xff]
        %v279 = vld [vmem:[#allocation2 + $0xe0] sm:$0xff]
        %v280 = vld [vmem:[#allocation2 + $0xe8] sm:$0xff]
        %v281 = vld [vmem:[#allocation2 + $0xf0] sm:$0xff]
        %v282 = vld [vmem:[#allocation2 + $0xf8] sm:$0xff]
        %283 = vmatprep.subr.mxu0 %v252
        %284 = vmatpush1.msra.mxu0 %v251
        %285 = vmatprep.subr.mxu0 %v254
        %286 = vmatpush1.msra.mxu0 %v253
        %287 = vmatprep.subr.mxu0 %v256
        %288 = vmatpush1.msra.mxu0 %v255
        %289 = vmatprep.subr.mxu0 %v258
        %290 = vmatpush1.msra.mxu0 %v257
        %291 = vmatprep.subr.mxu0 %v260
        %292 = vmatpush1.msra.mxu0 %v259
        %293 = vmatprep.subr.mxu0 %v262
        %294 = vmatpush1.msra.mxu0 %v261
        %295 = vmatprep.subr.mxu0 %v264
        %296 = vmatpush1.msra.mxu0 %v263
        %297 = vmatprep.subr.mxu0 %v266
        %298 = vmatpush1.msra.mxu0 %v265
        %299 = vmatprep.subr.mxu0 %v268
        %300 = vmatpush1.msra.mxu0 %v267
        %301 = vmatprep.subr.mxu0 %v270
        %302 = vmatpush1.msra.mxu0 %v269
        %303 = vmatprep.subr.mxu0 %v272
        %304 = vmatpush1.msra.mxu0 %v271
        %305 = vmatprep.subr.mxu0 %v274
        %306 = vmatpush1.msra.mxu0 %v273
        %307 = vmatprep.subr.mxu0 %v276
        %308 = vmatpush1.msra.mxu0 %v275
        %309 = vmatprep.subr.mxu0 %v278
        %310 = vmatpush1.msra.mxu0 %v277
        %311 = vmatprep.subr.mxu0 %v280
        %312 = vmatpush1.msra.mxu0 %v279
        %313 = vmatprep.subr.mxu0 %v282
        %314 = vmatpush1.msra.mxu0 %v281
        %315 = vmatprep.subr.mxu0 0.0
        %316 = vmatpush1.msra.mxu0 0.0
        %317 = vmatprep.subr.mxu0 0.0
        %318 = vmatpush1.msra.mxu0 0.0
        %319 = vmatprep.subr.mxu0 0.0
        %320 = vmatpush1.msra.mxu0 0.0
        %321 = vmatprep.subr.mxu0 0.0
        %322 = vmatpush1.msra.mxu0 0.0
        %323 = vmatprep.subr.mxu0 0.0
        %324 = vmatpush1.msra.mxu0 0.0
        %325 = vmatprep.subr.mxu0 0.0
        %326 = vmatpush1.msra.mxu0 0.0
        %327 = vmatprep.subr.mxu0 0.0
        %328 = vmatpush1.msra.mxu0 0.0
        %329 = vmatprep.subr.mxu0 0.0
        %330 = vmatpush1.msra.mxu0 0.0
        %331 = vmatprep.subr.mxu0 0.0
        %332 = vmatpush1.msra.mxu0 0.0
        %333 = vmatprep.subr.mxu0 0.0
        %334 = vmatpush1.msra.mxu0 0.0
        %335 = vmatprep.subr.mxu0 0.0
        %336 = vmatpush1.msra.mxu0 0.0
        %337 = vmatprep.subr.mxu0 0.0
        %338 = vmatpush1.msra.mxu0 0.0
        %339 = vmatprep.subr.mxu0 0.0
        %340 = vmatpush1.msra.mxu0 0.0
        %341 = vmatprep.subr.mxu0 0.0
        %342 = vmatpush1.msra.mxu0 0.0
        %343 = vmatprep.subr.mxu0 0.0
        %344 = vmatpush1.msra.mxu0 0.0
        %345 = vmatprep.subr.mxu0 0.0
        %346 = vmatpush1.msra.mxu0 0.0
        %347 = vmatprep.mubr.f32.mxu0 0.0
        %348 = vmatmul.mubr.f32.gmra.mrb[0].mxu0 %v250
        %v349 = vpop.f32.mrb[0].mxu0
        %v350 = vadd.f32 0.0, %v349
        %v351 = vpop.f32.mrb[0].mxu0
        %v352 = vadd.f32 0.0, %v351
        %353 = vdwg.mxu0
        %v354 = vld [vmem:[%s2] sm:$0x1]
        %v356 = vlaneseq
        %v357 = vshrl.u32 %v356, 7
        %v358 = vsub.s32 0, %v357
        %v359 = vrot.slane %v354, %v358
        %v361 = vadd.f32 %v350, %v359
        %v362 = vmax.f32 %v361, 0.0
        %v363 = vld [vmem:[#allocation5] sm:$0xff]
        %v364 = vld [vmem:[#allocation5 + $0x8] sm:$0xff]
        %v365 = vld [vmem:[#allocation5 + $0x10] sm:$0xff]
        %v366 = vld [vmem:[#allocation5 + $0x18] sm:$0xff]
        %v367 = vld [vmem:[#allocation5 + $0x20] sm:$0xff]
        %v368 = vld [vmem:[#allocation5 + $0x28] sm:$0xff]
        %v369 = vld [vmem:[#allocation5 + $0x30] sm:$0xff]
        %v370 = vld [vmem:[#allocation5 + $0x38] sm:$0xff]
        %v371 = vld [vmem:[#allocation5 + $0x40] sm:$0xff]
        %v372 = vld [vmem:[#allocation5 + $0x48] sm:$0xff]
        %v373 = vld [vmem:[#allocation5 + $0x50] sm:$0xff]
        %v374 = vld [vmem:[#allocation5 + $0x58] sm:$0xff]
        %v375 = vld [vmem:[#allocation5 + $0x60] sm:$0xff]
        %v376 = vld [vmem:[#allocation5 + $0x68] sm:$0xff]
        %v377 = vld [vmem:[#allocation5 + $0x70] sm:$0xff]
        %v378 = vld [vmem:[#allocation5 + $0x78] sm:$0xff]
        %v379 = vld [vmem:[%s4] sm:$0x1]
        %v381 = vlaneseq
        %v382 = vshrl.u32 %v381, 7
        %v383 = vsub.s32 0, %v382
        %v384 = vrot.slane %v379, %v383
        %386 = vmatprep.subr.mxu0 0.0
        %387 = vmatpush1.msra.mxu0 %v363
        %388 = vmatprep.subr.mxu0 0.0
        %389 = vmatpush1.msra.mxu0 %v364
        %390 = vmatprep.subr.mxu0 0.0
        %391 = vmatpush1.msra.mxu0 %v365
        %392 = vmatprep.subr.mxu0 0.0
        %393 = vmatpush1.msra.mxu0 %v366
        %394 = vmatprep.subr.mxu0 0.0
        %395 = vmatpush1.msra.mxu0 %v367
        %396 = vmatprep.subr.mxu0 0.0
        %397 = vmatpush1.msra.mxu0 %v368
        %398 = vmatprep.subr.mxu0 0.0
        %399 = vmatpush1.msra.mxu0 %v369
        %400 = vmatprep.subr.mxu0 0.0
        %401 = vmatpush1.msra.mxu0 %v370
        %402 = vmatprep.subr.mxu0 0.0
        %403 = vmatpush1.msra.mxu0 %v371
        %404 = vmatprep.subr.mxu0 0.0
        %405 = vmatpush1.msra.mxu0 %v372
        %406 = vmatprep.subr.mxu0 0.0
        %407 = vmatpush1.msra.mxu0 %v373
        %408 = vmatprep.subr.mxu0 0.0
        %409 = vmatpush1.msra.mxu0 %v374
        %410 = vmatprep.subr.mxu0 0.0
        %411 = vmatpush1.msra.mxu0 %v375
        %412 = vmatprep.subr.mxu0 0.0
        %413 = vmatpush1.msra.mxu0 %v376
        %414 = vmatprep.subr.mxu0 0.0
        %415 = vmatpush1.msra.mxu0 %v377
        %416 = vmatprep.subr.mxu0 0.0
        %417 = vmatpush1.msra.mxu0 %v378
        %418 = vmatprep.subr.mxu0 0.0
        %419 = vmatpush1.msra.mxu0 0.0
        %420 = vmatprep.subr.mxu0 0.0
        %421 = vmatpush1.msra.mxu0 0.0
        %422 = vmatprep.subr.mxu0 0.0
        %423 = vmatpush1.msra.mxu0 0.0
        %424 = vmatprep.subr.mxu0 0.0
        %425 = vmatpush1.msra.mxu0 0.0
        %426 = vmatprep.subr.mxu0 0.0
        %427 = vmatpush1.msra.mxu0 0.0
        %428 = vmatprep.subr.mxu0 0.0
        %429 = vmatpush1.msra.mxu0 0.0
        %430 = vmatprep.subr.mxu0 0.0
        %431 = vmatpush1.msra.mxu0 0.0
        %432 = vmatprep.subr.mxu0 0.0
        %433 = vmatpush1.msra.mxu0 0.0
        %434 = vmatprep.subr.mxu0 0.0
        %435 = vmatpush1.msra.mxu0 0.0
        %436 = vmatprep.subr.mxu0 0.0
        %437 = vmatpush1.msra.mxu0 0.0
        %438 = vmatprep.subr.mxu0 0.0
        %439 = vmatpush1.msra.mxu0 0.0
        %440 = vmatprep.subr.mxu0 0.0
        %441 = vmatpush1.msra.mxu0 0.0
        %442 = vmatprep.subr.mxu0 0.0
        %443 = vmatpush1.msra.mxu0 0.0
        %444 = vmatprep.subr.mxu0 0.0
        %445 = vmatpush1.msra.mxu0 0.0
        %446 = vmatprep.subr.mxu0 0.0
        %447 = vmatpush1.msra.mxu0 0.0
        %448 = vmatprep.subr.mxu0 0.0
        %449 = vmatpush1.msra.mxu0 0.0
        %450 = vmatprep.mubr.f32.mxu0 0.0
        %451 = vmatmul.mubr.f32.gmra.mrb[0].mxu0 %v362
        %v452 = vpop.f32.mrb[0].mxu0
        %v453 = vadd.f32 %v384, %v452
        %v454 = vpop.f32.mrb[0].mxu0
        %455 = vdwg.mxu0
        %v456 = vadd.f32 %v453, %v352
        %v457 = vmax.f32 %v456, 0.0
        %458 = vst [vmem:[%s245] sm:$0xff] %v457
        %s459 = sand.u32 %s139, 1
        %s460 = scalar_lea.sflag [#allocation4], %s459
        %s461 = sand.u32 %s139, 1
        %s462 = smul.addr %s461, 8
        %s463 = scalar_lea.vmem [#allocation7], %s462
        // Predicated region
        $region49: #{_forward_jit.1} parent=39 // pred_check
          %p464 = pneg %p149
        $region50: #{_forward_jit.1} parent=39 // pred_check_branch
          %466 = sbr.rel (%p464) target = $region52
        $region51: #{_forward_jit.1} parent=39 // pred_region
          %s468 = ssub.s32 128, 128
          %469 = vsyncadd %s460, %s468
          %s470 = smul.addr %s21, 128
          %s471 = scalar_lea.hbm %s5, %s470
          %s473 = sshll.u32 %s463, 4
          %s474 = int_to_ptr.vmem [resolvable:$true] %s473
          %476 = dma.vmem_to_hbm [thread:$0]  %s474, 128, %s471, %s460
        $region52: #{_forward_jit.1} parent=39 // pred_fallthru
          _
      $region40: #{_forward_jit.1} parent=5 // pred_fallthru
        _
      %p477 = scmp.le.s32.totalorder 2, %s16
      // Predicated region
      $region53: #{_forward_jit.1} parent=5 // pred_check
        %p478 = pneg %p477
      $region54: #{_forward_jit.1} parent=5 // pred_check_branch
        %480 = sbr.rel (%p478) target = $region56
      $region55: #{_forward_jit.1} parent=5 // pred_region
        %s481 = ssub.s32 %s16, 2
        // Predicated region
        $region57: #{_forward_jit.1} parent=55 // pred_check
          %p482 = pneg %p155
        $region58: #{_forward_jit.1} parent=55 // pred_check_branch
          %484 = sbr.rel (%p482) target = $region60
        $region59: #{_forward_jit.1} parent=55 // pred_region
          %s485 = sand.u32 %s140, 1
          %s486 = scalar_lea.sflag [#allocation4], %s485
          %s487 = sand.u32 %s140, 1
          %s488 = smul.addr %s487, 8
          %s489 = scalar_lea.vmem [#allocation7], %s488
          %490 = dma.done %s486, 128
        $region60: #{_forward_jit.1} parent=55 // pred_fallthru
          _
      $region56: #{_forward_jit.1} parent=5 // pred_fallthru
        _
    $region6: #{_forward_jit.1} parent=1 // loop_footer
      %s20 = sadd.s32 1, %s16
    $region7: #{_forward_jit.1} parent=1 // loop_footer_branch
      %15 = sbr.rel target = $region3
    $region8: #{_forward_jit.1} parent=1 // loop_exit
      _
    %491 = vsyncpa [#allocation3], 1
    %s492 = scalar_lea.sflag [#allocation3], 1
    %493 = vsyncpa %s492, 1
    %494 = vsyncpa [#allocation6], 1
    %495 = vsyncpa [#allocation4], 1
    %s496 = scalar_lea.sflag [#allocation4], 1
    %497 = vsyncpa %s496, 1

// kernel: _forward_jit.1
$region0: #{_forward_jit.1}
  #allocation0 [shape = 'u32[]', space=smem, size = 0x4, offset = 0x4, fixed_abs, tag = 'smem constant byte address 0x4 - core index']
  #allocation1 [shape = 'u32[144,128]{1,0:T(1,128)}', space=vmem, size = 0x12000, scoped, tag = 'internal scratch']
  %s0 = inlined_call_operand.vmem [shape: f32[16,128], index: 0, kind: input, shape index: {}]
  %s1 = inlined_call_operand.hbm [shape: f32[128,256], index: 1, kind: input, shape index: {}]
  %s2 = inlined_call_operand.vmem [shape: f32[1,128], index: 2, kind: input, shape index: {}]
  %s3 = inlined_call_operand.hbm [shape: f32[128,128], index: 3, kind: input, shape index: {}]
  %s4 = inlined_call_operand.vmem [shape: f32[1,128], index: 4, kind: input, shape index: {}]
  %s5 = inlined_call_operand.hbm [shape: f32[16,128], index: 5, kind: output, shape index: {}]
  %s6 = sld [smem:[#allocation0]]
  $region61: #{_forward_jit.1} parent=0
    _
  %s8 = ssub.s32 1, %s6
  %s9 = scalar_select 0, %s8, %s6
  $region1: #{_forward_jit.1} parent=0
    #allocation2 [shape = 'u8[131072]{0}', space=vmem, size = 0x20000, scoped, tag = 'input window, operand 1, single buffered']
    #allocation3 [shape = 's32[2]{0}', space=sflag, size = 0x8, scoped, tag = 'scoped memory for _forward_jit.1']
    #allocation4 [shape = 's32[2]{0}', space=sflag, size = 0x8, scoped, tag = 'scoped memory for _forward_jit.1']
    #allocation5 [shape = 'u8[65536]{0}', space=vmem, size = 0x10000, scoped, tag = 'input window, operand 3, single buffered']
    #allocation6 [shape = 's32[1]{0}', space=sflag, size = 0x4, scoped, tag = 'scoped memory for _forward_jit.1']
    #allocation7 [shape = 'u8[8192]{0}', space=vmem, size = 0x2000, scoped, tag = 'output window, operand 0']
    %10 = vsyncpa [#allocation3], 0
    %11 = vsyncpa [#allocation6], 0
    %12 = vsyncpa [#allocation4], 0
    %s13 = scalar_lea.sflag [#allocation4], 1
    %14 = vsyncpa %s13, 0
    loop: start=0, step=1, limit=4
    $region2: #{_forward_jit.1} parent=1 // loop_pre_header
      _
    $region3: #{_forward_jit.1} parent=1 // loop_header
      %s16 = sphi 0, %s20
      %p17 = scmp.ge.s32.totalorder %s16, 4
      %s26 = sphi 0, %s28
      %s29 = sphi 0, %s26
      %s30 = sphi 0, %s29
      %s46 = sphi 0, %s30
      %s50 = sphi 0, %s50
      %s52 = sphi 0, %s50
      %s53 = sphi 0, %s52
      %s67 = sphi 0, %s53
      %s71 = sphi 0, %s71
      %s73 = sphi 0, %s71
      %s74 = sphi 0, %s73
      %s88 = sphi 0, %s74
      %s92 = sphi 0, %s92
      %s94 = sphi 0, %s92
      %s95 = sphi 0, %s94
      %s109 = sphi 0, %s95
      %s113 = sphi 0, %s113
      %s115 = sphi 0, %s113
      %s116 = sphi 0, %s115
      %s130 = sphi 0, %s116
      %s136 = sphi 0, %s138
      %s139 = sphi 0, %s136
      %s140 = sphi 0, %s139
      %s156 = sphi 0, %s140
    $region4: #{_forward_jit.1} parent=1 // loop_header_branch
      %19 = sbr.rel (%p17) target = $region8
    $region5: #{_forward_jit.1} parent=1 // loop_body
      %s21 = ssub.s32 %s16, 1
      %s22 = ssub.s32 %s16, 2
      %s23 = sadd.s32 %s16, 1
      %s24 = ssub.s32 %s16, %s23
      %p25 = scmp.eq.s32.totalorder %s24, 0
      %s27 = sadd.s32 %s26, 1
      %s28 = scalar_select %p25, %s26, %s27
      %p31 = pneg %p25
      %p32 = scmp.eq.s32.totalorder %s16, 1
      %p33 = por %p31, %p32
      %p34 = scmp.ne.s32.totalorder %s26, %s29
      %p35 = scmp.eq.s32.totalorder %s16, 0
      %p36 = por %p34, %p35
      %p37 = scmp.ne.s32.totalorder %s26, %s29
      %p38 = scmp.eq.s32.totalorder %s21, 1
      %p39 = por %p37, %p38
      %p40 = scmp.ne.s32.totalorder %s29, %s30
      %p41 = scmp.eq.s32.totalorder %s21, 0
      %p42 = por %p40, %p41
      %p43 = scmp.ne.s32.totalorder %s29, %s30
      %p44 = scmp.eq.s32.totalorder %s22, 1
      %p45 = por %p43, %p44
      %p47 = scmp.ne.s32.totalorder %s30, %s46
      %p48 = scmp.eq.s32.totalorder %s22, 0
      %p49 = por %p47, %p48
      %s51 = sadd.s32 %s50, 1
      %p54 = scmp.eq.s32.totalorder %s16, 1
      %p55 = scmp.ne.s32.totalorder %s50, %s52
      %p56 = scmp.eq.s32.totalorder %s16, 0
      %p57 = por %p55, %p56
      %p58 = scmp.ne.s32.totalorder %s50, %s52
      %p59 = scmp.eq.s32.totalorder %s21, 1
      %p60 = por %p58, %p59
      %p61 = scmp.ne.s32.totalorder %s52, %s53
      %p62 = scmp.eq.s32.totalorder %s21, 0
      %p63 = por %p61, %p62
      %p64 = scmp.ne.s32.totalorder %s52, %s53
      %p65 = scmp.eq.s32.totalorder %s22, 1
      %p66 = por %p64, %p65
      %p68 = scmp.ne.s32.totalorder %s53, %s67
      %p69 = scmp.eq.s32.totalorder %s22, 0
      %p70 = por %p68, %p69
      %s72 = sadd.s32 %s71, 1
      %p75 = scmp.eq.s32.totalorder %s16, 1
      %p76 = scmp.ne.s32.totalorder %s71, %s73
      %p77 = scmp.eq.s32.totalorder %s16, 0
      %p78 = por %p76, %p77
      %p79 = scmp.ne.s32.totalorder %s71, %s73
      %p80 = scmp.eq.s32.totalorder %s21, 1
      %p81 = por %p79, %p80
      %p82 = scmp.ne.s32.totalorder %s73, %s74
      %p83 = scmp.eq.s32.totalorder %s21, 0
      %p84 = por %p82, %p83
      %p85 = scmp.ne.s32.totalorder %s73, %s74
      %p86 = scmp.eq.s32.totalorder %s22, 1
      %p87 = por %p85, %p86
      %p89 = scmp.ne.s32.totalorder %s74, %s88
      %p90 = scmp.eq.s32.totalorder %s22, 0
      %p91 = por %p89, %p90
      %s93 = sadd.s32 %s92, 1
      %p96 = scmp.eq.s32.totalorder %s16, 1
      %p97 = scmp.ne.s32.totalorder %s92, %s94
      %p98 = scmp.eq.s32.totalorder %s16, 0
      %p99 = por %p97, %p98
      %p100 = scmp.ne.s32.totalorder %s92, %s94
      %p101 = scmp.eq.s32.totalorder %s21, 1
      %p102 = por %p100, %p101
      %p103 = scmp.ne.s32.totalorder %s94, %s95
      %p104 = scmp.eq.s32.totalorder %s21, 0
      %p105 = por %p103, %p104
      %p106 = scmp.ne.s32.totalorder %s94, %s95
      %p107 = scmp.eq.s32.totalorder %s22, 1
      %p108 = por %p106, %p107
      %p110 = scmp.ne.s32.totalorder %s95, %s109
      %p111 = scmp.eq.s32.totalorder %s22, 0
      %p112 = por %p110, %p111
      %s114 = sadd.s32 %s113, 1
      %p117 = scmp.eq.s32.totalorder %s16, 1
      %p118 = scmp.ne.s32.totalorder %s113, %s115
      %p119 = scmp.eq.s32.totalorder %s16, 0
      %p120 = por %p118, %p119
      %p121 = scmp.ne.s32.totalorder %s113, %s115
      %p122 = scmp.eq.s32.totalorder %s21, 1
      %p123 = por %p121, %p122
      %p124 = scmp.ne.s32.totalorder %s115, %s116
      %p125 = scmp.eq.s32.totalorder %s21, 0
      %p126 = por %p124, %p125
      %p127 = scmp.ne.s32.totalorder %s115, %s116
      %p128 = scmp.eq.s32.totalorder %s22, 1
      %p129 = por %p127, %p128
      %p131 = scmp.ne.s32.totalorder %s116, %s130
      %p132 = scmp.eq.s32.totalorder %s22, 0
      %p133 = por %p131, %p132
      %s134 = ssub.s32 %s16, %s23
      %p135 = scmp.eq.s32.totalorder %s134, 0
      %s137 = sadd.s32 %s136, 1
      %s138 = scalar_select %p135, %s136, %s137
      %p141 = pneg %p135
      %p142 = scmp.eq.s32.totalorder %s16, 1
      %p143 = por %p141, %p142
      %p144 = scmp.ne.s32.totalorder %s136, %s139
      %p145 = scmp.eq.s32.totalorder %s16, 0
      %p146 = por %p144, %p145
      %p147 = scmp.ne.s32.totalorder %s136, %s139
      %p148 = scmp.eq.s32.totalorder %s21, 1
      %p149 = por %p147, %p148
      %p150 = scmp.ne.s32.totalorder %s139, %s140
      %p151 = scmp.eq.s32.totalorder %s21, 0
      %p152 = por %p150, %p151
      %p153 = scmp.ne.s32.totalorder %s139, %s140
      %p154 = scmp.eq.s32.totalorder %s22, 1
      %p155 = por %p153, %p154
      %p157 = scmp.ne.s32.totalorder %s140, %s156
      %p158 = scmp.eq.s32.totalorder %s22, 0
      %p159 = por %p157, %p158
      %p160 = scmp.le.s32.totalorder 1, %s16
      %p161 = scmp.lt.s32.totalorder %s16, 3
      %p162 = pnand %p160, %p161
      %p163 = pneg %p162
      // Predicated region
      $region9: #{_forward_jit.1} parent=5 // pred_check
        _
      $region10: #{_forward_jit.1} parent=5 // pred_check_branch
        %165 = sbr.rel (%p162) target = $region12
      $region11: #{_forward_jit.1} parent=5 // pred_region
        %s166 = ssub.s32 %s16, 1
        // Predicated region
        $region13: #{_forward_jit.1} parent=11 // pred_check
          %p167 = pneg %p63
        $region14: #{_forward_jit.1} parent=11 // pred_check_branch
          %169 = sbr.rel (%p167) target = $region16
        $region15: #{_forward_jit.1} parent=11 // pred_region
          %s171 = ssub.s32 4096, 4096
          %172 = vsyncadd [#allocation3], %s171
          %s173 = sshll.u32 [#allocation2], 4
          %s174 = int_to_ptr.vmem [resolvable:$true] %s173
          %179 = dma.hbm_to_vmem [thread:$0]  %s1, 4096, %s174, [#allocation3], 256, 256, 16
        $region16: #{_forward_jit.1} parent=11 // pred_fallthru
          _
        // Predicated region
        $region17: #{_forward_jit.1} parent=11 // pred_check
          %p180 = pneg %p84
        $region18: #{_forward_jit.1} parent=11 // pred_check_branch
          %182 = sbr.rel (%p180) target = $region20
        $region19: #{_forward_jit.1} parent=11 // pred_region
          _
        $region20: #{_forward_jit.1} parent=11 // pred_fallthru
          _
        // Predicated region
        $region21: #{_forward_jit.1} parent=11 // pred_check
          %p183 = pneg %p105
        $region22: #{_forward_jit.1} parent=11 // pred_check_branch
          %185 = sbr.rel (%p183) target = $region24
        $region23: #{_forward_jit.1} parent=11 // pred_region
          %s187 = ssub.s32 2048, 2048
          %188 = vsyncadd [#allocation6], %s187
          %s189 = sshll.u32 [#allocation5], 4
          %s190 = int_to_ptr.vmem [resolvable:$true] %s189
          %195 = dma.hbm_to_vmem [thread:$0]  %s3, 2048, %s190, [#allocation6], 128, 128, 8
        $region24: #{_forward_jit.1} parent=11 // pred_fallthru
          _
        // Predicated region
        $region25: #{_forward_jit.1} parent=11 // pred_check
          %p196 = pneg %p126
        $region26: #{_forward_jit.1} parent=11 // pred_check_branch
          %198 = sbr.rel (%p196) target = $region28
        $region27: #{_forward_jit.1} parent=11 // pred_region
          _
        $region28: #{_forward_jit.1} parent=11 // pred_fallthru
          _
      $region12: #{_forward_jit.1} parent=5 // pred_fallthru
        _
      %p199 = scmp.lt.s32.totalorder %s16, 2
      // Predicated region
      $region29: #{_forward_jit.1} parent=5 // pred_check
        %p200 = pneg %p199
      $region30: #{_forward_jit.1} parent=5 // pred_check_branch
        %202 = sbr.rel (%p200) target = $region32
      $region31: #{_forward_jit.1} parent=5 // pred_region
        // Predicated region
        $region33: #{_forward_jit.1} parent=31 // pred_check
          %p203 = pneg %p36
        $region34: #{_forward_jit.1} parent=31 // pred_check_branch
          %205 = sbr.rel (%p203) target = $region36
        $region35: #{_forward_jit.1} parent=31 // pred_region
          %p206 = scmp.lt.s32.totalorder %s16, 1
          %s207 = scalar_select %p206, %s16, 1
          %s208 = smul.addr %s207, 8
          %s209 = scalar_lea.vmem %s0, %s208
        $region36: #{_forward_jit.1} parent=31 // pred_fallthru
          _
      $region32: #{_forward_jit.1} parent=5 // pred_fallthru
        _
      %p210 = scmp.le.s32.totalorder 1, %s16
      %p211 = scmp.lt.s32.totalorder %s16, 3
      %p212 = pnand %p210, %p211
      %p213 = pneg %p212
      // Predicated region
      $region37: #{_forward_jit.1} parent=5 // pred_check
        _
      $region38: #{_forward_jit.1} parent=5 // pred_check_branch
        %215 = sbr.rel (%p212) target = $region40
      $region39: #{_forward_jit.1} parent=5 // pred_region
        %s216 = ssub.s32 %s16, 1
        // Predicated region
        $region41: #{_forward_jit.1} parent=39 // pred_check
          %p217 = pneg %p63
        $region42: #{_forward_jit.1} parent=39 // pred_check_branch
          %219 = sbr.rel (%p217) target = $region44
        $region43: #{_forward_jit.1} parent=39 // pred_region
          %220 = dma.done [#allocation3], 4096
        $region44: #{_forward_jit.1} parent=39 // pred_fallthru
          _
        // Predicated region
        $region45: #{_forward_jit.1} parent=39 // pred_check
          %p221 = pneg %p105
        $region46: #{_forward_jit.1} parent=39 // pred_check_branch
          %223 = sbr.rel (%p221) target = $region48
        $region47: #{_forward_jit.1} parent=39 // pred_region
          %224 = dma.done [#allocation6], 2048
        $region48: #{_forward_jit.1} parent=39 // pred_fallthru
          _
        %p225 = scmp.lt.s32.totalorder %s21, 1
        %s226 = scalar_select %p225, %s21, 1
        %s227 = smul.addr %s226, 8
        %s228 = scalar_lea.vmem %s0, %s227
        %p229 = pneg %p42
        %p230 = pneg %p39
        %p231 = pneg %p63
        %p232 = pneg %p60
        %p233 = pneg %p84
        %p234 = pneg %p81
        %p235 = pneg %p105
        %p236 = pneg %p102
        %p237 = pneg %p126
        %p238 = pneg %p123
        %p239 = pneg %p152
        %p240 = pneg %p149
        %s241 = sand.u32 %s139, 1
        %s242 = scalar_lea.sflag [#allocation4], %s241
        %s243 = sand.u32 %s139, 1
        %s244 = smul.addr %s243, 8
        %s245 = scalar_lea.vmem [#allocation7], %s244
        %p246 = scmp.lt.s32.totalorder %s21, 1
        %s247 = scalar_select %p246, %s21, 1
        %s248 = smul.addr %s247, 8
        %s249 = scalar_lea.vmem %s0, %s248
        %v250 = vld [vmem:[%s249] sm:$0xff]
        %v251 = vld [vmem:[#allocation2] sm:$0xff]
        %v252 = vld [vmem:[#allocation2 + $0x8] sm:$0xff]
        %v253 = vld [vmem:[#allocation2 + $0x10] sm:$0xff]
        %v254 = vld [vmem:[#allocation2 + $0x18] sm:$0xff]
        %v255 = vld [vmem:[#allocation2 + $0x20] sm:$0xff]
        %v256 = vld [vmem:[#allocation2 + $0x28] sm:$0xff]
        %v257 = vld [vmem:[#allocation2 + $0x30] sm:$0xff]
        %v258 = vld [vmem:[#allocation2 + $0x38] sm:$0xff]
        %v259 = vld [vmem:[#allocation2 + $0x40] sm:$0xff]
        %v260 = vld [vmem:[#allocation2 + $0x48] sm:$0xff]
        %v261 = vld [vmem:[#allocation2 + $0x50] sm:$0xff]
        %v262 = vld [vmem:[#allocation2 + $0x58] sm:$0xff]
        %v263 = vld [vmem:[#allocation2 + $0x60] sm:$0xff]
        %v264 = vld [vmem:[#allocation2 + $0x68] sm:$0xff]
        %v265 = vld [vmem:[#allocation2 + $0x70] sm:$0xff]
        %v266 = vld [vmem:[#allocation2 + $0x78] sm:$0xff]
        %v267 = vld [vmem:[#allocation2 + $0x80] sm:$0xff]
        %v268 = vld [vmem:[#allocation2 + $0x88] sm:$0xff]
        %v269 = vld [vmem:[#allocation2 + $0x90] sm:$0xff]
        %v270 = vld [vmem:[#allocation2 + $0x98] sm:$0xff]
        %v271 = vld [vmem:[#allocation2 + $0xa0] sm:$0xff]
        %v272 = vld [vmem:[#allocation2 + $0xa8] sm:$0xff]
        %v273 = vld [vmem:[#allocation2 + $0xb0] sm:$0xff]
        %v274 = vld [vmem:[#allocation2 + $0xb8] sm:$0xff]
        %v275 = vld [vmem:[#allocation2 + $0xc0] sm:$0xff]
        %v276 = vld [vmem:[#allocation2 + $0xc8] sm:$0xff]
        %v277 = vld [vmem:[#allocation2 + $0xd0] sm:$0xff]
        %v278 = vld [vmem:[#allocation2 + $0xd8] sm:$0xff]
        %v279 = vld [vmem:[#allocation2 + $0xe0] sm:$0xff]
        %v280 = vld [vmem:[#allocation2 + $0xe8] sm:$0xff]
        %v281 = vld [vmem:[#allocation2 + $0xf0] sm:$0xff]
        %v282 = vld [vmem:[#allocation2 + $0xf8] sm:$0xff]
        %283 = vmatprep.subr.mxu0 %v252
        %284 = vmatpush1.msra.mxu0 %v251
        %285 = vmatprep.subr.mxu0 %v254
        %286 = vmatpush1.msra.mxu0 %v253
        %287 = vmatprep.subr.mxu0 %v256
        %288 = vmatpush1.msra.mxu0 %v255
        %289 = vmatprep.subr.mxu0 %v258
        %290 = vmatpush1.msra.mxu0 %v257
        %291 = vmatprep.subr.mxu0 %v260
        %292 = vmatpush1.msra.mxu0 %v259
        %293 = vmatprep.subr.mxu0 %v262
        %294 = vmatpush1.msra.mxu0 %v261
        %295 = vmatprep.subr.mxu0 %v264
        %296 = vmatpush1.msra.mxu0 %v263
        %297 = vmatprep.subr.mxu0 %v266
        %298 = vmatpush1.msra.mxu0 %v265
        %299 = vmatprep.subr.mxu0 %v268
        %300 = vmatpush1.msra.mxu0 %v267
        %301 = vmatprep.subr.mxu0 %v270
        %302 = vmatpush1.msra.mxu0 %v269
        %303 = vmatprep.subr.mxu0 %v272
        %304 = vmatpush1.msra.mxu0 %v271
        %305 = vmatprep.subr.mxu0 %v274
        %306 = vmatpush1.msra.mxu0 %v273
        %307 = vmatprep.subr.mxu0 %v276
        %308 = vmatpush1.msra.mxu0 %v275
        %309 = vmatprep.subr.mxu0 %v278
        %310 = vmatpush1.msra.mxu0 %v277
        %311 = vmatprep.subr.mxu0 %v280
        %312 = vmatpush1.msra.mxu0 %v279
        %313 = vmatprep.subr.mxu0 %v282
        %314 = vmatpush1.msra.mxu0 %v281
        %315 = vmatprep.subr.mxu0 0.0
        %316 = vmatpush1.msra.mxu0 0.0
        %317 = vmatprep.subr.mxu0 0.0
        %318 = vmatpush1.msra.mxu0 0.0
        %319 = vmatprep.subr.mxu0 0.0
        %320 = vmatpush1.msra.mxu0 0.0
        %321 = vmatprep.subr.mxu0 0.0
        %322 = vmatpush1.msra.mxu0 0.0
        %323 = vmatprep.subr.mxu0 0.0
        %324 = vmatpush1.msra.mxu0 0.0
        %325 = vmatprep.subr.mxu0 0.0
        %326 = vmatpush1.msra.mxu0 0.0
        %327 = vmatprep.subr.mxu0 0.0
        %328 = vmatpush1.msra.mxu0 0.0
        %329 = vmatprep.subr.mxu0 0.0
        %330 = vmatpush1.msra.mxu0 0.0
        %331 = vmatprep.subr.mxu0 0.0
        %332 = vmatpush1.msra.mxu0 0.0
        %333 = vmatprep.subr.mxu0 0.0
        %334 = vmatpush1.msra.mxu0 0.0
        %335 = vmatprep.subr.mxu0 0.0
        %336 = vmatpush1.msra.mxu0 0.0
        %337 = vmatprep.subr.mxu0 0.0
        %338 = vmatpush1.msra.mxu0 0.0
        %339 = vmatprep.subr.mxu0 0.0
        %340 = vmatpush1.msra.mxu0 0.0
        %341 = vmatprep.subr.mxu0 0.0
        %342 = vmatpush1.msra.mxu0 0.0
        %343 = vmatprep.subr.mxu0 0.0
        %344 = vmatpush1.msra.mxu0 0.0
        %345 = vmatprep.subr.mxu0 0.0
        %346 = vmatpush1.msra.mxu0 0.0
        %347 = vmatprep.mubr.f32.mxu0 0.0
        %348 = vmatmul.mubr.f32.gmra.mrb[0].mxu0 %v250
        %v349 = vpop.f32.mrb[0].mxu0
        %v350 = vadd.f32 0.0, %v349
        %v351 = vpop.f32.mrb[0].mxu0
        %v352 = vadd.f32 0.0, %v351
        %353 = vdwg.mxu0
        %v354 = vld [vmem:[%s2] sm:$0x1]
        %v356 = vlaneseq
        %v357 = vshrl.u32 %v356, 7
        %v358 = vsub.s32 0, %v357
        %v359 = vrot.slane %v354, %v358
        %v361 = vadd.f32 %v350, %v359
        %v362 = vmax.f32 %v361, 0.0
        %v363 = vld [vmem:[#allocation5] sm:$0xff]
        %v364 = vld [vmem:[#allocation5 + $0x8] sm:$0xff]
        %v365 = vld [vmem:[#allocation5 + $0x10] sm:$0xff]
        %v366 = vld [vmem:[#allocation5 + $0x18] sm:$0xff]
        %v367 = vld [vmem:[#allocation5 + $0x20] sm:$0xff]
        %v368 = vld [vmem:[#allocation5 + $0x28] sm:$0xff]
        %v369 = vld [vmem:[#allocation5 + $0x30] sm:$0xff]
        %v370 = vld [vmem:[#allocation5 + $0x38] sm:$0xff]
        %v371 = vld [vmem:[#allocation5 + $0x40] sm:$0xff]
        %v372 = vld [vmem:[#allocation5 + $0x48] sm:$0xff]
        %v373 = vld [vmem:[#allocation5 + $0x50] sm:$0xff]
        %v374 = vld [vmem:[#allocation5 + $0x58] sm:$0xff]
        %v375 = vld [vmem:[#allocation5 + $0x60] sm:$0xff]
        %v376 = vld [vmem:[#allocation5 + $0x68] sm:$0xff]
        %v377 = vld [vmem:[#allocation5 + $0x70] sm:$0xff]
        %v378 = vld [vmem:[#allocation5 + $0x78] sm:$0xff]
        %v379 = vld [vmem:[%s4] sm:$0x1]
        %v381 = vlaneseq
        %v382 = vshrl.u32 %v381, 7
        %v383 = vsub.s32 0, %v382
        %v384 = vrot.slane %v379, %v383
        %386 = vmatprep.subr.mxu0 0.0
        %387 = vmatpush1.msra.mxu0 %v363
        %388 = vmatprep.subr.mxu0 0.0
        %389 = vmatpush1.msra.mxu0 %v364
        %390 = vmatprep.subr.mxu0 0.0
        %391 = vmatpush1.msra.mxu0 %v365
        %392 = vmatprep.subr.mxu0 0.0
        %393 = vmatpush1.msra.mxu0 %v366
        %394 = vmatprep.subr.mxu0 0.0
        %395 = vmatpush1.msra.mxu0 %v367
        %396 = vmatprep.subr.mxu0 0.0
        %397 = vmatpush1.msra.mxu0 %v368
        %398 = vmatprep.subr.mxu0 0.0
        %399 = vmatpush1.msra.mxu0 %v369
        %400 = vmatprep.subr.mxu0 0.0
        %401 = vmatpush1.msra.mxu0 %v370
        %402 = vmatprep.subr.mxu0 0.0
        %403 = vmatpush1.msra.mxu0 %v371
        %404 = vmatprep.subr.mxu0 0.0
        %405 = vmatpush1.msra.mxu0 %v372
        %406 = vmatprep.subr.mxu0 0.0
        %407 = vmatpush1.msra.mxu0 %v373
        %408 = vmatprep.subr.mxu0 0.0
        %409 = vmatpush1.msra.mxu0 %v374
        %410 = vmatprep.subr.mxu0 0.0
        %411 = vmatpush1.msra.mxu0 %v375
        %412 = vmatprep.subr.mxu0 0.0
        %413 = vmatpush1.msra.mxu0 %v376
        %414 = vmatprep.subr.mxu0 0.0
        %415 = vmatpush1.msra.mxu0 %v377
        %416 = vmatprep.subr.mxu0 0.0
        %417 = vmatpush1.msra.mxu0 %v378
        %418 = vmatprep.subr.mxu0 0.0
        %419 = vmatpush1.msra.mxu0 0.0
        %420 = vmatprep.subr.mxu0 0.0
        %421 = vmatpush1.msra.mxu0 0.0
        %422 = vmatprep.subr.mxu0 0.0
        %423 = vmatpush1.msra.mxu0 0.0
        %424 = vmatprep.subr.mxu0 0.0
        %425 = vmatpush1.msra.mxu0 0.0
        %426 = vmatprep.subr.mxu0 0.0
        %427 = vmatpush1.msra.mxu0 0.0
        %428 = vmatprep.subr.mxu0 0.0
        %429 = vmatpush1.msra.mxu0 0.0
        %430 = vmatprep.subr.mxu0 0.0
        %431 = vmatpush1.msra.mxu0 0.0
        %432 = vmatprep.subr.mxu0 0.0
        %433 = vmatpush1.msra.mxu0 0.0
        %434 = vmatprep.subr.mxu0 0.0
        %435 = vmatpush1.msra.mxu0 0.0
        %436 = vmatprep.subr.mxu0 0.0
        %437 = vmatpush1.msra.mxu0 0.0
        %438 = vmatprep.subr.mxu0 0.0
        %439 = vmatpush1.msra.mxu0 0.0
        %440 = vmatprep.subr.mxu0 0.0
        %441 = vmatpush1.msra.mxu0 0.0
        %442 = vmatprep.subr.mxu0 0.0
        %443 = vmatpush1.msra.mxu0 0.0
        %444 = vmatprep.subr.mxu0 0.0
        %445 = vmatpush1.msra.mxu0 0.0
        %446 = vmatprep.subr.mxu0 0.0
        %447 = vmatpush1.msra.mxu0 0.0
        %448 = vmatprep.subr.mxu0 0.0
        %449 = vmatpush1.msra.mxu0 0.0
        %450 = vmatprep.mubr.f32.mxu0 0.0
        %451 = vmatmul.mubr.f32.gmra.mrb[0].mxu0 %v362
        %v452 = vpop.f32.mrb[0].mxu0
        %v453 = vadd.f32 %v384, %v452
        %v454 = vpop.f32.mrb[0].mxu0
        %455 = vdwg.mxu0
        %v456 = vadd.f32 %v453, %v352
        %v457 = vmax.f32 %v456, 0.0
        %458 = vst [vmem:[%s245] sm:$0xff] %v457
        %s459 = sand.u32 %s139, 1
        %s460 = scalar_lea.sflag [#allocation4], %s459
        %s461 = sand.u32 %s139, 1
        %s462 = smul.addr %s461, 8
        %s463 = scalar_lea.vmem [#allocation7], %s462
        // Predicated region
        $region49: #{_forward_jit.1} parent=39 // pred_check
          %p464 = pneg %p149
        $region50: #{_forward_jit.1} parent=39 // pred_check_branch
          %466 = sbr.rel (%p464) target = $region52
        $region51: #{_forward_jit.1} parent=39 // pred_region
          %s468 = ssub.s32 128, 128
          %469 = vsyncadd %s460, %s468
          %s470 = smul.addr %s21, 128
          %s471 = scalar_lea.hbm %s5, %s470
          %s473 = sshll.u32 %s463, 4
          %s474 = int_to_ptr.vmem [resolvable:$true] %s473
          %476 = dma.vmem_to_hbm [thread:$0]  %s474, 128, %s471, %s460
        $region52: #{_forward_jit.1} parent=39 // pred_fallthru
          _
      $region40: #{_forward_jit.1} parent=5 // pred_fallthru
        _
      %p477 = scmp.le.s32.totalorder 2, %s16
      // Predicated region
      $region53: #{_forward_jit.1} parent=5 // pred_check
        %p478 = pneg %p477
      $region54: #{_forward_jit.1} parent=5 // pred_check_branch
        %480 = sbr.rel (%p478) target = $region56
      $region55: #{_forward_jit.1} parent=5 // pred_region
        %s481 = ssub.s32 %s16, 2
        // Predicated region
        $region57: #{_forward_jit.1} parent=55 // pred_check
          %p482 = pneg %p155
        $region58: #{_forward_jit.1} parent=55 // pred_check_branch
          %484 = sbr.rel (%p482) target = $region60
        $region59: #{_forward_jit.1} parent=55 // pred_region
          %s485 = sand.u32 %s140, 1
          %s486 = scalar_lea.sflag [#allocation4], %s485
          %s487 = sand.u32 %s140, 1
          %s488 = smul.addr %s487, 8
          %s489 = scalar_lea.vmem [#allocation7], %s488
          %490 = dma.done %s486, 128
        $region60: #{_forward_jit.1} parent=55 // pred_fallthru
          _
      $region56: #{_forward_jit.1} parent=5 // pred_fallthru
        _
    $region6: #{_forward_jit.1} parent=1 // loop_footer
      %s20 = sadd.s32 1, %s16
    $region7: #{_forward_jit.1} parent=1 // loop_footer_branch
      %15 = sbr.rel target = $region3
    $region8: #{_forward_jit.1} parent=1 // loop_exit
      _
    %491 = vsyncpa [#allocation3], 1
    %s492 = scalar_lea.sflag [#allocation3], 1
    %493 = vsyncpa %s492, 1
    %494 = vsyncpa [#allocation6], 1
    %495 = vsyncpa [#allocation4], 1
    %s496 = scalar_lea.sflag [#allocation4], 1
    %497 = vsyncpa %s496, 1

</llo_original>
